<compile_context>
chip_gen: v5e
topology: v5e:2x2
jax: 0.10.0
libtpu: 0.0.40
codegen_flags: <defaults>
</compile_context>

<pallas_src>
import jax
import jax.numpy as jnp
from jax.experimental import pallas as pl
from jax.experimental.pallas import tpu as pltpu


def _round_up(a: int, b: int) -> int:
    return ((a + b - 1) // b) * b


def _ffwd_kernel(x_ref, w1_ref, b1_ref, w2_ref, b2_ref, s_ref, out_ref, mask_ref):
    """One (tmf, Df) lane-folded tile of the forward pass.

    Each kernel row packs `fold` original rows along the lane axis, so
    Df = fold * d_out (=128 when d_out=16) and Kf = fold * d_in.  The weights are
    block-diagonal (kron(I_fold, W)), so a single dense matmul processes all
    folded rows at once.  `s_ref` = kron(I_fold, ones(d_out, d_out)) turns exp(z)
    into the per-group softmax denominator, broadcast within each lane group.
    """
    x = x_ref[...].astype(jnp.float32)

    # out = sigmoid(fc(x)) : exp on the EUP, divide via approximate reciprocal.
    h = jnp.dot(x, w1_ref[...], preferred_element_type=jnp.float32) + b1_ref[...]
    out = pl.reciprocal(1.0 + jnp.exp(-h), approx=True)

    # mask = softmax(masker(out)) within each d_out-wide lane group.
    z = jnp.dot(out, w2_ref[...], preferred_element_type=jnp.float32) + b2_ref[...]
    # Subtracting the max over the whole 128-lane row (>= every group's own max)
    # is a valid stabilizer: a per-group softmax is invariant to subtracting any
    # per-row constant, and `out` is sigmoid-bounded so the cross-group spread of
    # z is tiny (no underflow risk for realistic weights).
    z = z - jnp.max(z, axis=-1, keepdims=True)
    e = jnp.exp(z)
    denom = jnp.dot(e, s_ref[...], preferred_element_type=jnp.float32)
    mask = e * pl.reciprocal(denom, approx=True)

    out_ref[...] = (out * mask).astype(out_ref.dtype)
    mask_ref[...] = mask.astype(mask_ref.dtype)


def localization_feed_fwd(x, w1, b1, w2, b2, *, tile_rows=512, out_dtype=None):
    """LocalizationFeedFwd forward.

    x: (..., d_in); w1: (d_in, d_out) (torch weight transposed); b1: (d_out,);
    w2: (d_out, d_out); b2: (d_out,).
    Returns (out * mask, mask), each shaped (..., d_out) with dtype `out_dtype`
    (default: x.dtype; pass jnp.bfloat16 to cut output write traffic in half).
    """
    orig_shape = x.shape
    d_in = orig_shape[-1]
    d_out = w1.shape[1]
    if out_dtype is None:
        out_dtype = x.dtype

    # Fold `fold` consecutive rows into the 128-lane axis when d_out divides 128.
    fold = 128 // d_out if (d_out <= 128 and 128 % d_out == 0) else 1
    Kf = d_in * fold
    Df = d_out * fold

    xf = x.reshape(-1, d_in)
    M = xf.shape[0]

    # Folded-row tile: ~tile_rows original rows per grid step, multiple of 8,
    # clamped so tiny inputs become a single full-array block.
    Mf = (M + fold - 1) // fold                      # folded rows actually needed
    tmf = max(8, _round_up(max(1, tile_rows // fold), 8))
    tmf = min(tmf, _round_up(Mf, 8))
    Mf_pad = _round_up(Mf, tmf)
    Mp = Mf_pad * fold                               # padded original-row count

    if Mp != M:
        xf = jnp.pad(xf, ((0, Mp - M), (0, 0)))
    x_fold = xf.reshape(Mf_pad, Kf)                  # free, row-major reshape

    # Block-diagonal folded parameters (tiny; VMEM-resident across the grid
    # thanks to the constant index_maps below).
    eye = jnp.eye(fold, dtype=jnp.float32)
    w1f = jnp.kron(eye, w1.astype(jnp.float32))                        # (Kf, Df)
    w2f = jnp.kron(eye, w2.astype(jnp.float32))                        # (Df, Df)
    sf = jnp.kron(eye, jnp.ones((d_out, d_out), jnp.float32))          # (Df, Df)
    b1f = jnp.tile(b1.astype(jnp.float32), fold).reshape(1, Df)
    b2f = jnp.tile(b2.astype(jnp.float32), fold).reshape(1, Df)

    grid = (Mf_pad // tmf,)
    out_f, mask_f = pl.pallas_call(
        _ffwd_kernel,
        out_shape=(
            jax.ShapeDtypeStruct((Mf_pad, Df), out_dtype),
            jax.ShapeDtypeStruct((Mf_pad, Df), out_dtype),
        ),
        grid_spec=pltpu.PrefetchScalarGridSpec(
            num_scalar_prefetch=0,
            grid=grid,
            in_specs=[
                pl.BlockSpec((tmf, Kf), lambda i: (i, 0)),   # folded activations
                pl.BlockSpec((Kf, Df), lambda i: (0, 0)),    # block-diag fc weight
                pl.BlockSpec((1, Df), lambda i: (0, 0)),     # tiled fc bias
                pl.BlockSpec((Df, Df), lambda i: (0, 0)),    # block-diag masker weight
                pl.BlockSpec((1, Df), lambda i: (0, 0)),     # tiled masker bias
                pl.BlockSpec((Df, Df), lambda i: (0, 0)),    # group-sum matrix
            ],
            out_specs=[
                pl.BlockSpec((tmf, Df), lambda i: (i, 0)),
                pl.BlockSpec((tmf, Df), lambda i: (i, 0)),
            ],
        ),
        compiler_params=pltpu.CompilerParams(
            dimension_semantics=("parallel",),
        ),
    )(x_fold, w1f, b1f, w2f, b2f, sf)

    out_shape = orig_shape[:-1] + (d_out,)
    out = out_f.reshape(Mp, d_out)[:M].reshape(out_shape)
    mask = mask_f.reshape(Mp, d_out)[:M].reshape(out_shape)
    return out, mask


def _reference(x, w1, b1, w2, b2):
    out = jax.nn.sigmoid(x @ w1 + b1)
    mask = jax.nn.softmax(out @ w2 + b2, axis=-1)
    return out * mask, mask


if __name__ == "__main__":
    input_dims, output_dims = 32, 16

    key = jax.random.PRNGKey(0)
    kx, kx2, kw1, kb1, kw2, kb2 = jax.random.split(key, 6)

    # torch-Linear-like uniform init; weights stored as (in, out) = torch W.T.
    lim1 = 1.0 / jnp.sqrt(input_dims)
    lim2 = 1.0 / jnp.sqrt(output_dims)
    w1 = jax.random.uniform(kw1, (input_dims, output_dims), jnp.float32, -lim1, lim1)
    b1 = jax.random.uniform(kb1, (output_dims,), jnp.float32, -lim1, lim1)
    w2 = jax.random.uniform(kw2, (output_dims, output_dims), jnp.float32, -lim2, lim2)
    b2 = jax.random.uniform(kb2, (output_dims,), jnp.float32, -lim2, lim2)

    # Case 1: (batch, seq) = (2, 8).
    x = jax.random.normal(kx, (2, 8, input_dims), dtype=jnp.float32)
    out, mask = localization_feed_fwd(x, w1, b1, w2, b2)
    jax.block_until_ready((out, mask))
    ref_out, ref_mask = _reference(x, w1, b1, w2, b2)
    assert out.shape == (2, 8, output_dims) and mask.shape == (2, 8, output_dims)
    # approx=True reciprocals trade a few ULPs for the EUP fast path.
    assert jnp.allclose(out, ref_out, atol=2e-3, rtol=2e-3)
    assert jnp.allclose(mask, ref_mask, atol=2e-3, rtol=2e-3)

    # Case 2: ragged row count (exercises the padding / tail handling).
    x2 = jax.random.normal(kx2, (3, 5, input_dims), dtype=jnp.float32)
    out2, mask2 = localization_feed_fwd(x2, w1, b1, w2, b2)
    jax.block_until_ready((out2, mask2))
    ref_out2, ref_mask2 = _reference(x2, w1, b1, w2, b2)
    assert out2.shape == (3, 5, output_dims) and mask2.shape == (3, 5, output_dims)
    assert jnp.allclose(out2, ref_out2, atol=2e-3, rtol=2e-3)
    assert jnp.allclose(mask2, ref_mask2, atol=2e-3, rtol=2e-3)

    print("KERNEL_OK")
</pallas_src>

<mosaic_0001>
module attributes {stable_mosaic.version = 11 : i64} {
  func.func @_ffwd_kernel(%arg0: i32, %arg1: memref<8x256xf32, #tpu.memory_space<vmem>>, %arg2: memref<256x128xf32, #tpu.memory_space<vmem>>, %arg3: memref<1x128xf32, #tpu.memory_space<vmem>>, %arg4: memref<128x128xf32, #tpu.memory_space<vmem>>, %arg5: memref<1x128xf32, #tpu.memory_space<vmem>>, %arg6: memref<128x128xf32, #tpu.memory_space<vmem>>, %arg7: memref<8x128xf32, #tpu.memory_space<vmem>>, %arg8: memref<8x128xf32, #tpu.memory_space<vmem>>) attributes {dimension_semantics = [#tpu.dimension_semantics<parallel>], iteration_bounds = array<i64: 1>, scalar_prefetch = 0 : i64, scratch_operands = 0 : i64, tpu.core_type = #tpu.core_type<tc>, window_params = [{transform_indices = @transform_0, window_bounds = array<i64: 8, 256>}, {pipeline_mode = #tpu.pipeline_mode<synchronous>, transform_indices = @transform_1, window_bounds = array<i64: 256, 128>}, {pipeline_mode = #tpu.pipeline_mode<synchronous>, transform_indices = @transform_2, window_bounds = array<i64: 1, 128>}, {pipeline_mode = #tpu.pipeline_mode<synchronous>, transform_indices = @transform_3, window_bounds = array<i64: 128, 128>}, {pipeline_mode = #tpu.pipeline_mode<synchronous>, transform_indices = @transform_4, window_bounds = array<i64: 1, 128>}, {pipeline_mode = #tpu.pipeline_mode<synchronous>, transform_indices = @transform_5, window_bounds = array<i64: 128, 128>}, {transform_indices = @transform_6, window_bounds = array<i64: 8, 128>}, {transform_indices = @transform_7, window_bounds = array<i64: 8, 128>}]} {
    %c0 = arith.constant 0 : index
    %c0_0 = arith.constant 0 : index
    %0 = vector.load %arg1[%c0, %c0_0] : memref<8x256xf32, #tpu.memory_space<vmem>>, vector<8x256xf32>
    %c0_1 = arith.constant 0 : index
    %c0_2 = arith.constant 0 : index
    %1 = vector.load %arg2[%c0_1, %c0_2] : memref<256x128xf32, #tpu.memory_space<vmem>>, vector<256x128xf32>
    %cst = arith.constant dense<0.000000e+00> : vector<8x128xf32>
    %2 = tpu.matmul %0, %1, %cst {dimension_numbers = #tpu.dot_dimension_numbers<[1], [0], [0], [1], [0, 0, 1, 1], [], []>} : vector<8x256xf32>, vector<256x128xf32>, vector<8x128xf32> -> vector<8x128xf32>
    %c0_3 = arith.constant 0 : index
    %c0_4 = arith.constant 0 : index
    %3 = vector.load %arg3[%c0_3, %c0_4] : memref<1x128xf32, #tpu.memory_space<vmem>>, vector<1x128xf32>
    %4 = vector.broadcast %3 : vector<1x128xf32> to vector<8x128xf32>
    %5 = arith.addf %2, %4 : vector<8x128xf32>
    %cst_5 = arith.constant 0.000000e+00 : f32
    %6 = vector.broadcast %cst_5 : f32 to vector<8x128xf32>
    %7 = arith.subf %6, %5 : vector<8x128xf32>
    %8 = math.exp %7 : vector<8x128xf32>
    %cst_6 = arith.constant 1.000000e+00 : f32
    %9 = vector.broadcast %cst_6 : f32 to vector<8x128xf32>
    %10 = arith.addf %9, %8 : vector<8x128xf32>
    %11 = tpu.reciprocal %10 {approx = true} : vector<8x128xf32> -> vector<8x128xf32>
    %c0_7 = arith.constant 0 : index
    %c0_8 = arith.constant 0 : index
    %12 = vector.load %arg4[%c0_7, %c0_8] : memref<128x128xf32, #tpu.memory_space<vmem>>, vector<128x128xf32>
    %cst_9 = arith.constant dense<0.000000e+00> : vector<8x128xf32>
    %13 = tpu.matmul %11, %12, %cst_9 {dimension_numbers = #tpu.dot_dimension_numbers<[1], [0], [0], [1], [0, 0, 1, 1], [], []>} : vector<8x128xf32>, vector<128x128xf32>, vector<8x128xf32> -> vector<8x128xf32>
    %c0_10 = arith.constant 0 : index
    %c0_11 = arith.constant 0 : index
    %14 = vector.load %arg5[%c0_10, %c0_11] : memref<1x128xf32, #tpu.memory_space<vmem>>, vector<1x128xf32>
    %15 = vector.broadcast %14 : vector<1x128xf32> to vector<8x128xf32>
    %16 = arith.addf %13, %15 : vector<8x128xf32>
    %cst_12 = arith.constant dense<0xFF800000> : vector<8xf32>
    %17 = vector.multi_reduction <maximumf>, %16, %cst_12 [1] : vector<8x128xf32> to vector<8xf32>
    %18 = vector.shape_cast %17 : vector<8xf32> to vector<8x1xf32>
    %19 = vector.broadcast %18 : vector<8x1xf32> to vector<8x128xf32>
    %20 = arith.subf %16, %19 : vector<8x128xf32>
    %21 = math.exp %20 : vector<8x128xf32>
    %c0_13 = arith.constant 0 : index
    %c0_14 = arith.constant 0 : index
    %22 = vector.load %arg6[%c0_13, %c0_14] : memref<128x128xf32, #tpu.memory_space<vmem>>, vector<128x128xf32>
    %cst_15 = arith.constant dense<0.000000e+00> : vector<8x128xf32>
    %23 = tpu.matmul %21, %22, %cst_15 {dimension_numbers = #tpu.dot_dimension_numbers<[1], [0], [0], [1], [0, 0, 1, 1], [], []>} : vector<8x128xf32>, vector<128x128xf32>, vector<8x128xf32> -> vector<8x128xf32>
    %24 = tpu.reciprocal %23 {approx = true} : vector<8x128xf32> -> vector<8x128xf32>
    %25 = arith.mulf %21, %24 : vector<8x128xf32>
    %26 = arith.mulf %11, %25 : vector<8x128xf32>
    %c0_16 = arith.constant 0 : index
    %c0_17 = arith.constant 0 : index
    %27 = vector.load %arg7[%c0_16, %c0_17] : memref<8x128xf32, #tpu.memory_space<vmem>>, vector<8x128xf32>
    tpu.vector_store %arg7[%c0_16, %c0_17], %26 {strides = array<i32>} : memref<8x128xf32, #tpu.memory_space<vmem>>, vector<8x128xf32>,
    %c0_18 = arith.constant 0 : index
    %c0_19 = arith.constant 0 : index
    %28 = vector.load %arg8[%c0_18, %c0_19] : memref<8x128xf32, #tpu.memory_space<vmem>>, vector<8x128xf32>
    tpu.vector_store %arg8[%c0_18, %c0_19], %25 {strides = array<i32>} : memref<8x128xf32, #tpu.memory_space<vmem>>, vector<8x128xf32>,
    return
  }
  func.func @transform_0(%arg0: i32) -> (i32, i32) {
    %c0_i32 = arith.constant 0 : i32
    %c0_i32_0 = arith.constant 0 : i32
    return %arg0, %c0_i32 : i32, i32
  }
  func.func @transform_1(%arg0: i32) -> (i32, i32) {
    %c0_i32 = arith.constant 0 : i32
    %c0_i32_0 = arith.constant 0 : i32
    %c0_i32_1 = arith.constant 0 : i32
    return %c0_i32, %c0_i32_0 : i32, i32
  }
  func.func @transform_2(%arg0: i32) -> (i32, i32) {
    %c0_i32 = arith.constant 0 : i32
    %c0_i32_0 = arith.constant 0 : i32
    %c0_i32_1 = arith.constant 0 : i32
    return %c0_i32, %c0_i32_0 : i32, i32
  }
  func.func @transform_3(%arg0: i32) -> (i32, i32) {
    %c0_i32 = arith.constant 0 : i32
    %c0_i32_0 = arith.constant 0 : i32
    %c0_i32_1 = arith.constant 0 : i32
    return %c0_i32, %c0_i32_0 : i32, i32
  }
  func.func @transform_4(%arg0: i32) -> (i32, i32) {
    %c0_i32 = arith.constant 0 : i32
    %c0_i32_0 = arith.constant 0 : i32
    %c0_i32_1 = arith.constant 0 : i32
    return %c0_i32, %c0_i32_0 : i32, i32
  }
  func.func @transform_5(%arg0: i32) -> (i32, i32) {
    %c0_i32 = arith.constant 0 : i32
    %c0_i32_0 = arith.constant 0 : i32
    %c0_i32_1 = arith.constant 0 : i32
    return %c0_i32, %c0_i32_0 : i32, i32
  }
  func.func @transform_6(%arg0: i32) -> (i32, i32) {
    %c0_i32 = arith.constant 0 : i32
    %c0_i32_0 = arith.constant 0 : i32
    return %arg0, %c0_i32 : i32, i32
  }
  func.func @transform_7(%arg0: i32) -> (i32, i32) {
    %c0_i32 = arith.constant 0 : i32
    %c0_i32_0 = arith.constant 0 : i32
    return %arg0, %c0_i32 : i32, i32
  }
}

</mosaic_0001>

<llo_original>
// kernel: tpu_custom_call.1
$region0: #{tpu_custom_call.1}
  #allocation0 [shape = 'u32[]', space=smem, size = 0x4, offset = 0x4, fixed_abs, tag = 'smem constant byte address 0x4 - core index']
  #allocation1 [shape = 'u32[72,128]{1,0:T(1,128)}', space=vmem, size = 0x9000, scoped, tag = 'internal scratch']
  %s0 = inlined_call_operand.hbm [shape: f32[8,256], index: 0, kind: input, shape index: {}]
  %s1 = inlined_call_operand.hbm [shape: f32[256,128], index: 1, kind: input, shape index: {}]
  %s2 = inlined_call_operand.vmem [shape: f32[1,128], index: 2, kind: input, shape index: {}]
  %s3 = inlined_call_operand.hbm [shape: f32[128,128], index: 3, kind: input, shape index: {}]
  %s4 = inlined_call_operand.vmem [shape: f32[1,128], index: 4, kind: input, shape index: {}]
  %s5 = inlined_call_operand.hbm [shape: f32[128,128], index: 5, kind: input, shape index: {}]
  %s6 = inlined_call_operand.hbm [shape: f32[8,128], index: 6, kind: output, shape index: {0}]
  %s7 = inlined_call_operand.hbm [shape: f32[8,128], index: 7, kind: output, shape index: {1}]
  %8 = xla_tuple %s6, %s7
  %s9 = sld [smem:[#allocation0]]
  $region58: #{tpu_custom_call.1} parent=0
    _
  %s11 = ssub.s32 1, %s9
  %s12 = scalar_select 0, %s11, %s9
  $region1: #{tpu_custom_call.1} parent=0
    #allocation2 [shape = 'u8[8192]{0}', space=vmem, size = 0x2000, scoped, tag = 'input window, operand 0, single buffered']
    #allocation3 [shape = 's32[1]{0}', space=sflag, size = 0x4, scoped, tag = 'scoped memory for tpu_custom_call.1']
    #allocation4 [shape = 's32[1]{0}', space=sflag, size = 0x4, scoped, tag = 'scoped memory for tpu_custom_call.1']
    #allocation5 [shape = 'u8[131072]{0}', space=vmem, size = 0x20000, scoped, tag = 'input window, operand 1, single buffered']
    #allocation6 [shape = 's32[1]{0}', space=sflag, size = 0x4, scoped, tag = 'scoped memory for tpu_custom_call.1']
    #allocation7 [shape = 'u8[65536]{0}', space=vmem, size = 0x10000, scoped, tag = 'input window, operand 3, single buffered']
    #allocation8 [shape = 'u8[65536]{0}', space=vmem, size = 0x10000, scoped, tag = 'input window, operand 5, single buffered']
    #allocation9 [shape = 's32[1]{0}', space=sflag, size = 0x4, scoped, tag = 'scoped memory for tpu_custom_call.1']
    #allocation10 [shape = 'u8[4096]{0}', space=vmem, size = 0x1000, scoped, tag = 'output window, operand 0, single buffered']
    #allocation11 [shape = 'u8[4096]{0}', space=vmem, size = 0x1000, scoped, tag = 'output window, operand 1, single buffered']
    #allocation12 [shape = 's32[1]{0}', space=sflag, size = 0x4, scoped, tag = 'scoped memory for tpu_custom_call.1']
    %13 = vsyncpa [#allocation3], 0
    %14 = vsyncpa [#allocation6], 0
    %15 = vsyncpa [#allocation9], 0
    %16 = vsyncpa [#allocation4], 0
    %17 = vsyncpa [#allocation12], 0
    // Predicated region
    $region2: #{tpu_custom_call.1} parent=1 // pred_check
      _
    $region3: #{tpu_custom_call.1} parent=1 // pred_check_branch
      %19 = sbr.rel (0) target = $region5
    $region4: #{tpu_custom_call.1} parent=1 // pred_region
      %21 = vsyncadd [#allocation3], 0
      %s23 = sshll.u32 %s0, 4
      %s24 = int_to_ptr.hbm [resolvable:$true] %s23
      %s25 = sshll.u32 [#allocation2], 4
      %s26 = int_to_ptr.vmem [resolvable:$true] %s25
      %28 = dma.hbm_to_vmem [thread:$0]  %s24, 256, %s26, [#allocation3]
    $region5: #{tpu_custom_call.1} parent=1 // pred_fallthru
      _
    // Predicated region
    $region6: #{tpu_custom_call.1} parent=1 // pred_check
      _
    $region7: #{tpu_custom_call.1} parent=1 // pred_check_branch
      %30 = sbr.rel (0) target = $region9
    $region8: #{tpu_custom_call.1} parent=1 // pred_region
      %32 = vsyncadd [#allocation6], 0
      %s33 = sshll.u32 %s1, 4
      %s34 = int_to_ptr.hbm [resolvable:$true] %s33
      %s35 = sshll.u32 [#allocation5], 4
      %s36 = int_to_ptr.vmem [resolvable:$true] %s35
      %41 = dma.hbm_to_vmem [thread:$0]  %s34, 4096, %s36, [#allocation6], 128, 128, 8
    $region9: #{tpu_custom_call.1} parent=1 // pred_fallthru
      _
    // Predicated region
    $region10: #{tpu_custom_call.1} parent=1 // pred_check
      _
    $region11: #{tpu_custom_call.1} parent=1 // pred_check_branch
      %43 = sbr.rel (0) target = $region13
    $region12: #{tpu_custom_call.1} parent=1 // pred_region
      _
    $region13: #{tpu_custom_call.1} parent=1 // pred_fallthru
      _
    // Predicated region
    $region14: #{tpu_custom_call.1} parent=1 // pred_check
      _
    $region15: #{tpu_custom_call.1} parent=1 // pred_check_branch
      %45 = sbr.rel (0) target = $region17
    $region16: #{tpu_custom_call.1} parent=1 // pred_region
      %47 = vsyncadd [#allocation6], 0
      %s48 = sshll.u32 %s3, 4
      %s49 = int_to_ptr.hbm [resolvable:$true] %s48
      %s50 = sshll.u32 [#allocation7], 4
      %s51 = int_to_ptr.vmem [resolvable:$true] %s50
      %56 = dma.hbm_to_vmem [thread:$0]  %s49, 2048, %s51, [#allocation6], 128, 128, 8
    $region17: #{tpu_custom_call.1} parent=1 // pred_fallthru
      _
    // Predicated region
    $region18: #{tpu_custom_call.1} parent=1 // pred_check
      _
    $region19: #{tpu_custom_call.1} parent=1 // pred_check_branch
      %58 = sbr.rel (0) target = $region21
    $region20: #{tpu_custom_call.1} parent=1 // pred_region
      _
    $region21: #{tpu_custom_call.1} parent=1 // pred_fallthru
      _
    // Predicated region
    $region22: #{tpu_custom_call.1} parent=1 // pred_check
      _
    $region23: #{tpu_custom_call.1} parent=1 // pred_check_branch
      %60 = sbr.rel (0) target = $region25
    $region24: #{tpu_custom_call.1} parent=1 // pred_region
      %62 = vsyncadd [#allocation9], 0
      %s63 = sshll.u32 %s5, 4
      %s64 = int_to_ptr.hbm [resolvable:$true] %s63
      %s65 = sshll.u32 [#allocation8], 4
      %s66 = int_to_ptr.vmem [resolvable:$true] %s65
      %71 = dma.hbm_to_vmem [thread:$0]  %s64, 2048, %s66, [#allocation9], 128, 128, 8
    $region25: #{tpu_custom_call.1} parent=1 // pred_fallthru
      _
    // Predicated region
    $region26: #{tpu_custom_call.1} parent=1 // pred_check
      _
    $region27: #{tpu_custom_call.1} parent=1 // pred_check_branch
      %73 = sbr.rel (0) target = $region29
    $region28: #{tpu_custom_call.1} parent=1 // pred_region
      %75 = dma.done [#allocation3], 256
    $region29: #{tpu_custom_call.1} parent=1 // pred_fallthru
      _
    // Predicated region
    $region30: #{tpu_custom_call.1} parent=1 // pred_check
      _
    $region31: #{tpu_custom_call.1} parent=1 // pred_check_branch
      %77 = sbr.rel (0) target = $region33
    $region32: #{tpu_custom_call.1} parent=1 // pred_region
      %79 = dma.done [#allocation6], 4096
    $region33: #{tpu_custom_call.1} parent=1 // pred_fallthru
      _
    // Predicated region
    $region34: #{tpu_custom_call.1} parent=1 // pred_check
      _
    $region35: #{tpu_custom_call.1} parent=1 // pred_check_branch
      %81 = sbr.rel (0) target = $region37
    $region36: #{tpu_custom_call.1} parent=1 // pred_region
      %83 = dma.done [#allocation6], 2048
    $region37: #{tpu_custom_call.1} parent=1 // pred_fallthru
      _
    // Predicated region
    $region38: #{tpu_custom_call.1} parent=1 // pred_check
      _
    $region39: #{tpu_custom_call.1} parent=1 // pred_check_branch
      %85 = sbr.rel (0) target = $region41
    $region40: #{tpu_custom_call.1} parent=1 // pred_region
      %87 = dma.done [#allocation9], 2048
    $region41: #{tpu_custom_call.1} parent=1 // pred_fallthru
      _
    %v88 = vld [vmem:[#allocation2] sm:$0xff]
    %v89 = vld [vmem:[#allocation2 + $0x8] sm:$0xff]
    %v90 = vld [vmem:[#allocation5] sm:$0xff]
    %v91 = vld [vmem:[#allocation5 + $0x8] sm:$0xff]
    %v92 = vld [vmem:[#allocation5 + $0x10] sm:$0xff]
    %v93 = vld [vmem:[#allocation5 + $0x18] sm:$0xff]
    %v94 = vld [vmem:[#allocation5 + $0x20] sm:$0xff]
    %v95 = vld [vmem:[#allocation5 + $0x28] sm:$0xff]
    %v96 = vld [vmem:[#allocation5 + $0x30] sm:$0xff]
    %v97 = vld [vmem:[#allocation5 + $0x38] sm:$0xff]
    %v98 = vld [vmem:[#allocation5 + $0x40] sm:$0xff]
    %v99 = vld [vmem:[#allocation5 + $0x48] sm:$0xff]
    %v100 = vld [vmem:[#allocation5 + $0x50] sm:$0xff]
    %v101 = vld [vmem:[#allocation5 + $0x58] sm:$0xff]
    %v102 = vld [vmem:[#allocation5 + $0x60] sm:$0xff]
    %v103 = vld [vmem:[#allocation5 + $0x68] sm:$0xff]
    %v104 = vld [vmem:[#allocation5 + $0x70] sm:$0xff]
    %v105 = vld [vmem:[#allocation5 + $0x78] sm:$0xff]
    %v106 = vld [vmem:[#allocation5 + $0x80] sm:$0xff]
    %v107 = vld [vmem:[#allocation5 + $0x88] sm:$0xff]
    %v108 = vld [vmem:[#allocation5 + $0x90] sm:$0xff]
    %v109 = vld [vmem:[#allocation5 + $0x98] sm:$0xff]
    %v110 = vld [vmem:[#allocation5 + $0xa0] sm:$0xff]
    %v111 = vld [vmem:[#allocation5 + $0xa8] sm:$0xff]
    %v112 = vld [vmem:[#allocation5 + $0xb0] sm:$0xff]
    %v113 = vld [vmem:[#allocation5 + $0xb8] sm:$0xff]
    %v114 = vld [vmem:[#allocation5 + $0xc0] sm:$0xff]
    %v115 = vld [vmem:[#allocation5 + $0xc8] sm:$0xff]
    %v116 = vld [vmem:[#allocation5 + $0xd0] sm:$0xff]
    %v117 = vld [vmem:[#allocation5 + $0xd8] sm:$0xff]
    %v118 = vld [vmem:[#allocation5 + $0xe0] sm:$0xff]
    %v119 = vld [vmem:[#allocation5 + $0xe8] sm:$0xff]
    %v120 = vld [vmem:[#allocation5 + $0xf0] sm:$0xff]
    %v121 = vld [vmem:[#allocation5 + $0xf8] sm:$0xff]
    %v122 = vld [vmem:[%s2] sm:$0x1]
    %v124 = vperm.slane %v122, 0
    %126 = vmatpush.msra.mxu0 %v105
    %127 = vmatpush.msra.mxu0 %v104
    %128 = vmatpush.msra.mxu0 %v103
    %129 = vmatpush.msra.mxu0 %v102
    %130 = vmatpush.msra.mxu0 %v101
    %131 = vmatpush.msra.mxu0 %v100
    %132 = vmatpush.msra.mxu0 %v99
    %133 = vmatpush.msra.mxu0 %v98
    %134 = vmatpush.msra.mxu0 %v97
    %135 = vmatpush.msra.mxu0 %v96
    %136 = vmatpush.msra.mxu0 %v95
    %137 = vmatpush.msra.mxu0 %v94
    %138 = vmatpush.msra.mxu0 %v93
    %139 = vmatpush.msra.mxu0 %v92
    %140 = vmatpush.msra.mxu0 %v91
    %141 = vmatpush.msra.mxu0 %v90
    %142 = vmatmul.f32.gmra.mxu0 %v88
    %v143 = vpop.f32.mrf.mxu0
    %v144 = vadd.f32 %v124, %v143
    %145 = vdwg.mxu0
    %146 = vmatpush.msra.mxu0 %v121
    %147 = vmatpush.msra.mxu0 %v120
    %148 = vmatpush.msra.mxu0 %v119
    %149 = vmatpush.msra.mxu0 %v118
    %150 = vmatpush.msra.mxu0 %v117
    %151 = vmatpush.msra.mxu0 %v116
    %152 = vmatpush.msra.mxu0 %v115
    %153 = vmatpush.msra.mxu0 %v114
    %154 = vmatpush.msra.mxu0 %v113
    %155 = vmatpush.msra.mxu0 %v112
    %156 = vmatpush.msra.mxu0 %v111
    %157 = vmatpush.msra.mxu0 %v110
    %158 = vmatpush.msra.mxu0 %v109
    %159 = vmatpush.msra.mxu0 %v108
    %160 = vmatpush.msra.mxu0 %v107
    %161 = vmatpush.msra.mxu0 %v106
    %162 = vmatmul.f32.gmra.mxu0 %v89
    %v163 = vpop.f32.mrf.mxu0
    %v164 = vadd.f32 %v144, %v163
    %165 = vdwg.mxu0
    %v166 = vsub.f32 0.0, %v164
    %v167 = vmul.f32 %v166, 1.442695
    %v168 = vpow.pop %v167
    %v169 = vadd.f32 %v168, 1.0
    %v170 = vrcp.pop %v169
    %v171 = vld [vmem:[#allocation7] sm:$0xff]
    %v172 = vld [vmem:[#allocation7 + $0x8] sm:$0xff]
    %v173 = vld [vmem:[#allocation7 + $0x10] sm:$0xff]
    %v174 = vld [vmem:[#allocation7 + $0x18] sm:$0xff]
    %v175 = vld [vmem:[#allocation7 + $0x20] sm:$0xff]
    %v176 = vld [vmem:[#allocation7 + $0x28] sm:$0xff]
    %v177 = vld [vmem:[#allocation7 + $0x30] sm:$0xff]
    %v178 = vld [vmem:[#allocation7 + $0x38] sm:$0xff]
    %v179 = vld [vmem:[#allocation7 + $0x40] sm:$0xff]
    %v180 = vld [vmem:[#allocation7 + $0x48] sm:$0xff]
    %v181 = vld [vmem:[#allocation7 + $0x50] sm:$0xff]
    %v182 = vld [vmem:[#allocation7 + $0x58] sm:$0xff]
    %v183 = vld [vmem:[#allocation7 + $0x60] sm:$0xff]
    %v184 = vld [vmem:[#allocation7 + $0x68] sm:$0xff]
    %v185 = vld [vmem:[#allocation7 + $0x70] sm:$0xff]
    %v186 = vld [vmem:[#allocation7 + $0x78] sm:$0xff]
    %v187 = vld [vmem:[%s4] sm:$0x1]
    %v189 = vperm.slane %v187, 0
    %191 = vmatpush.msra.mxu0 %v186
    %192 = vmatpush.msra.mxu0 %v185
    %193 = vmatpush.msra.mxu0 %v184
    %194 = vmatpush.msra.mxu0 %v183
    %195 = vmatpush.msra.mxu0 %v182
    %196 = vmatpush.msra.mxu0 %v181
    %197 = vmatpush.msra.mxu0 %v180
    %198 = vmatpush.msra.mxu0 %v179
    %199 = vmatpush.msra.mxu0 %v178
    %200 = vmatpush.msra.mxu0 %v177
    %201 = vmatpush.msra.mxu0 %v176
    %202 = vmatpush.msra.mxu0 %v175
    %203 = vmatpush.msra.mxu0 %v174
    %204 = vmatpush.msra.mxu0 %v173
    %205 = vmatpush.msra.mxu0 %v172
    %206 = vmatpush.msra.mxu0 %v171
    %207 = vmatmul.f32.gmra.mxu0 %v170
    %v208 = vpop.f32.mrf.mxu0
    %v209 = vadd.f32 %v189, %v208
    %210 = vdwg.mxu0
    %211 = vmax.xlane.f32.xlu0 %v209
    %v212 = vpop.xlane.xlu0 %211
    %v213 = vsub.f32 %v209, %v212
    %v214 = vmul.f32 %v213, 1.442695
    %v215 = vpow.pop %v214
    %v216 = vld [vmem:[#allocation8] sm:$0xff]
    %v217 = vld [vmem:[#allocation8 + $0x8] sm:$0xff]
    %v218 = vld [vmem:[#allocation8 + $0x10] sm:$0xff]
    %v219 = vld [vmem:[#allocation8 + $0x18] sm:$0xff]
    %v220 = vld [vmem:[#allocation8 + $0x20] sm:$0xff]
    %v221 = vld [vmem:[#allocation8 + $0x28] sm:$0xff]
    %v222 = vld [vmem:[#allocation8 + $0x30] sm:$0xff]
    %v223 = vld [vmem:[#allocation8 + $0x38] sm:$0xff]
    %v224 = vld [vmem:[#allocation8 + $0x40] sm:$0xff]
    %v225 = vld [vmem:[#allocation8 + $0x48] sm:$0xff]
    %v226 = vld [vmem:[#allocation8 + $0x50] sm:$0xff]
    %v227 = vld [vmem:[#allocation8 + $0x58] sm:$0xff]
    %v228 = vld [vmem:[#allocation8 + $0x60] sm:$0xff]
    %v229 = vld [vmem:[#allocation8 + $0x68] sm:$0xff]
    %v230 = vld [vmem:[#allocation8 + $0x70] sm:$0xff]
    %v231 = vld [vmem:[#allocation8 + $0x78] sm:$0xff]
    %232 = vmatpush.msra.mxu0 %v231
    %233 = vmatpush.msra.mxu0 %v230
    %234 = vmatpush.msra.mxu0 %v229
    %235 = vmatpush.msra.mxu0 %v228
    %236 = vmatpush.msra.mxu0 %v227
    %237 = vmatpush.msra.mxu0 %v226
    %238 = vmatpush.msra.mxu0 %v225
    %239 = vmatpush.msra.mxu0 %v224
    %240 = vmatpush.msra.mxu0 %v223
    %241 = vmatpush.msra.mxu0 %v222
    %242 = vmatpush.msra.mxu0 %v221
    %243 = vmatpush.msra.mxu0 %v220
    %244 = vmatpush.msra.mxu0 %v219
    %245 = vmatpush.msra.mxu0 %v218
    %246 = vmatpush.msra.mxu0 %v217
    %247 = vmatpush.msra.mxu0 %v216
    %248 = vmatmul.f32.gmra.mxu0 %v215
    %v249 = vpop.f32.mrf.mxu0
    %v250 = vadd.f32 0.0, %v249
    %251 = vdwg.mxu0
    %v252 = vrcp.pop %v250
    %v253 = vmul.f32 %v215, %v252
    %v254 = vmul.f32 %v170, %v253
    %255 = vst [vmem:[#allocation10] sm:$0xff] %v254
    %256 = vst [vmem:[#allocation11] sm:$0xff] %v253
    // Predicated region
    $region42: #{tpu_custom_call.1} parent=1 // pred_check
      _
    $region43: #{tpu_custom_call.1} parent=1 // pred_check_branch
      %258 = sbr.rel (0) target = $region45
    $region44: #{tpu_custom_call.1} parent=1 // pred_region
      %260 = vsyncadd [#allocation4], 0
      %s262 = sshll.u32 [#allocation10], 4
      %s263 = int_to_ptr.vmem [resolvable:$true] %s262
      %s264 = sshll.u32 %s6, 4
      %s265 = int_to_ptr.hbm [resolvable:$true] %s264
      %267 = dma.vmem_to_hbm [thread:$0]  %s263, 128, %s265, [#allocation4]
    $region45: #{tpu_custom_call.1} parent=1 // pred_fallthru
      _
    // Predicated region
    $region46: #{tpu_custom_call.1} parent=1 // pred_check
      _
    $region47: #{tpu_custom_call.1} parent=1 // pred_check_branch
      %269 = sbr.rel (0) target = $region49
    $region48: #{tpu_custom_call.1} parent=1 // pred_region
      %271 = vsyncadd [#allocation12], 0
      %s273 = sshll.u32 [#allocation11], 4
      %s274 = int_to_ptr.vmem [resolvable:$true] %s273
      %s275 = sshll.u32 %s7, 4
      %s276 = int_to_ptr.hbm [resolvable:$true] %s275
      %278 = dma.vmem_to_hbm [thread:$0]  %s274, 128, %s276, [#allocation12]
    $region49: #{tpu_custom_call.1} parent=1 // pred_fallthru
      _
    // Predicated region
    $region50: #{tpu_custom_call.1} parent=1 // pred_check
      _
    $region51: #{tpu_custom_call.1} parent=1 // pred_check_branch
      %280 = sbr.rel (0) target = $region53
    $region52: #{tpu_custom_call.1} parent=1 // pred_region
      %282 = dma.done [#allocation4], 128
    $region53: #{tpu_custom_call.1} parent=1 // pred_fallthru
      _
    // Predicated region
    $region54: #{tpu_custom_call.1} parent=1 // pred_check
      _
    $region55: #{tpu_custom_call.1} parent=1 // pred_check_branch
      %284 = sbr.rel (0) target = $region57
    $region56: #{tpu_custom_call.1} parent=1 // pred_region
      %286 = dma.done [#allocation12], 128
    $region57: #{tpu_custom_call.1} parent=1 // pred_fallthru
      _
    %287 = vsyncpa [#allocation3], 1
    %288 = vsyncpa [#allocation6], 1
    %289 = vsyncpa [#allocation9], 1
    %290 = vsyncpa [#allocation4], 1
    %291 = vsyncpa [#allocation12], 1

</llo_original>
